<compile_context>
chip_gen: v7x
topology: tpu7x:2x2x1
jax: 0.10.0
libtpu: 0.0.40
codegen_flags: <defaults>
</compile_context>

<pallas_src>
import jax
import jax.numpy as jnp
from jax.experimental import pallas as pl
from jax.experimental.pallas import tpu as pltpu

_TARGET_BLOCK_BYTES = 4 * 1024 * 1024   # ~4 MiB per pipeline buffer
_VMEM_LIMIT_BYTES = 48 * 1024 * 1024    # headroom under v7x's 64 MiB physical VMEM


def _cdiv(a, b):
    return -(-a // b)


def _round_up(a, b):
    return _cdiv(a, b) * b


def bias3d_kernel(x_ref, b_ref, o_ref):
    # x_ref: (TR, TS) data tile; b_ref: (TR, 1) per-row bias broadcast across lanes.
    o_ref[...] = (x_ref[...] + b_ref[...]).astype(o_ref.dtype)


@jax.jit
def bias3d(x, bias):
    """x: (N, C, D, H, W); bias: (1, C, 1, 1, 1). Returns x + bias (broadcast over C)."""
    N, C, D, H, W = x.shape
    S = D * H * W
    R = N * C
    itemsize = jnp.dtype(x.dtype).itemsize
    out_dtype = jnp.promote_types(x.dtype, bias.dtype)

    x2 = x.reshape(R, S)
    # One bias scalar per (n, c) row (kept in the bias dtype; promotion happens in-kernel).
    b2 = jnp.broadcast_to(bias.reshape(1, C, 1), (N, C, 1)).reshape(R, 1)

    # dtype-aware sublane alignment: 8 for f32, 16 for bf16/f16, 32 for int8/fp8.
    row_align = 8 * max(1, 4 // itemsize)

    # Lane tile: multiple of 128, capped by the block byte budget at row_align rows.
    ts_cap = max(128, (_TARGET_BLOCK_BYTES // (row_align * itemsize)) // 128 * 128)
    TS = min(_round_up(S, 128), ts_cap)
    # Row tile: multiple of row_align filling the remaining block budget.
    tr_cap = max(row_align, (_TARGET_BLOCK_BYTES // (TS * itemsize)) // row_align * row_align)
    TR = min(_round_up(R, row_align), tr_cap)

    # Megacore (v7x): make sure at least one parallel axis has >= 2 grid steps when possible.
    if _cdiv(R, TR) == 1 and _cdiv(S, TS) == 1:
        if R >= 2 * row_align:
            TR = _round_up(_cdiv(R, 2), row_align)
        elif S >= 2 * 128:
            TS = _round_up(_cdiv(S, 2), 128)

    grid = (_cdiv(R, TR), _cdiv(S, TS))

    # Donate the flattened input buffer into the output when dtypes allow it.
    io_aliases = {0: 0} if out_dtype == x.dtype else {}

    out = pl.pallas_call(
        bias3d_kernel,
        out_shape=jax.ShapeDtypeStruct((R, S), out_dtype),
        grid_spec=pltpu.PrefetchScalarGridSpec(
            num_scalar_prefetch=0,
            grid=grid,
            in_specs=[
                pl.BlockSpec((TR, TS), lambda i, j: (i, j)),  # data tile
                pl.BlockSpec((TR, 1), lambda i, j: (i, 0)),   # bias column (reused over j)
            ],
            out_specs=pl.BlockSpec((TR, TS), lambda i, j: (i, j)),
        ),
        compiler_params=pltpu.CompilerParams(
            dimension_semantics=("parallel", "parallel"),
            vmem_limit_bytes=_VMEM_LIMIT_BYTES,
        ),
        input_output_aliases=io_aliases,
    )(x2, b2)

    return out.reshape(N, C, D, H, W)


class Bias3DLayerPallas:
    """Mirror of the PyTorch module: bias parameter of shape (1, channels, 1, 1, 1)."""

    def __init__(self, channels, initial=0.0, dtype=jnp.float32):
        self.bias = jnp.full((1, channels, 1, 1, 1), initial, dtype=dtype)

    def __call__(self, x):
        return bias3d(x, self.bias)


if __name__ == "__main__":
    key = jax.random.PRNGKey(0)

    # Case 1: lane-aligned spatial size (D*H*W = 512).
    N, C, D, H, W = 2, 4, 4, 8, 16
    x = jax.random.normal(key, (N, C, D, H, W), dtype=jnp.float32)
    layer = Bias3DLayerPallas(channels=C, initial=0.25)
    out = jax.block_until_ready(layer(x))
    ref = x + layer.bias
    assert out.shape == x.shape and out.dtype == x.dtype
    assert jnp.allclose(out, ref, atol=1e-6, rtol=1e-6)

    # Case 2: non-128-aligned spatial size (D*H*W = 105) — exercises the padded edge
    # block (masked lane writes only on the last tile; no full-extent fallback).
    key2 = jax.random.PRNGKey(1)
    N2, C2, D2, H2, W2 = 2, 4, 3, 5, 7
    x2 = jax.random.normal(key2, (N2, C2, D2, H2, W2), dtype=jnp.float32)
    layer2 = Bias3DLayerPallas(channels=C2, initial=-0.5)
    out2 = jax.block_until_ready(layer2(x2))
    ref2 = x2 + layer2.bias
    assert out2.shape == x2.shape and out2.dtype == x2.dtype
    assert jnp.allclose(out2, ref2, atol=1e-6, rtol=1e-6)

    print("KERNEL_OK")
</pallas_src>

<mosaic_0001>
module attributes {stable_mosaic.version = 11 : i64} {
  func.func @bias3d_kernel(%arg0: i32, %arg1: i32, %arg2: memref<8x256xf32, #tpu.memory_space<vmem>>, %arg3: memref<8x1xf32, #tpu.memory_space<vmem>>, %arg4: memref<8x256xf32, #tpu.memory_space<vmem>>) attributes {dimension_semantics = [#tpu.dimension_semantics<parallel>, #tpu.dimension_semantics<parallel>], iteration_bounds = array<i64: 1, 2>, scalar_prefetch = 0 : i64, scratch_operands = 0 : i64, tpu.core_type = #tpu.core_type<tc>, window_params = [{transform_indices = @transform_0, window_bounds = array<i64: 8, 256>}, {transform_indices = @transform_1, window_bounds = array<i64: 8, 1>}, {transform_indices = @transform_2, window_bounds = array<i64: 8, 256>}]} {
    %c0 = arith.constant 0 : index
    %c0_0 = arith.constant 0 : index
    %0 = vector.load %arg2[%c0, %c0_0] : memref<8x256xf32, #tpu.memory_space<vmem>>, vector<8x256xf32>
    %c0_1 = arith.constant 0 : index
    %c0_2 = arith.constant 0 : index
    %1 = vector.load %arg3[%c0_1, %c0_2] : memref<8x1xf32, #tpu.memory_space<vmem>>, vector<8x1xf32>
    %2 = vector.broadcast %1 : vector<8x1xf32> to vector<8x256xf32>
    %3 = arith.addf %0, %2 : vector<8x256xf32>
    %c0_3 = arith.constant 0 : index
    %c0_4 = arith.constant 0 : index
    %4 = vector.load %arg4[%c0_3, %c0_4] : memref<8x256xf32, #tpu.memory_space<vmem>>, vector<8x256xf32>
    tpu.vector_store %arg4[%c0_3, %c0_4], %3 {strides = array<i32>} : memref<8x256xf32, #tpu.memory_space<vmem>>, vector<8x256xf32>,
    return
  }
  func.func @transform_0(%arg0: i32, %arg1: i32) -> (i32, i32) {
    %c0_i32 = arith.constant 0 : i32
    return %arg0, %arg1 : i32, i32
  }
  func.func @transform_1(%arg0: i32, %arg1: i32) -> (i32, i32) {
    %c0_i32 = arith.constant 0 : i32
    %c0_i32_0 = arith.constant 0 : i32
    return %arg0, %c0_i32 : i32, i32
  }
  func.func @transform_2(%arg0: i32, %arg1: i32) -> (i32, i32) {
    %c0_i32 = arith.constant 0 : i32
    return %arg0, %arg1 : i32, i32
  }
}

</mosaic_0001>

<llo_original>
// kernel: bias3d.1
$region0: #{bias3d.1}
  #allocation0 [shape = 'u32[]', space=smem, size = 0x4, offset = 0x4, fixed_abs, tag = 'smem constant byte address 0x4 - core index']
  #allocation1 [shape = 'u32[144,128]{1,0:T(1,128)}', space=vmem, size = 0x12000, scoped, tag = 'internal scratch']
  %s0 = inlined_call_operand.vmem [shape: f32[8,512], index: 0, kind: input, shape index: {}, may-alias: {0,2}]
  %s1 = inlined_call_operand.vmem [shape: f32[8,1], index: 1, kind: input, shape index: {}]
  %s2 = inlined_call_operand.vmem [shape: f32[8,512], index: 2, kind: output, shape index: {}, may-alias: {0,2}]
  %s3 = sld [smem:[#allocation0]]
  $region41: #{bias3d.1} parent=0
    _
  %s5 = ssub.s32 1, %s3
  %s6 = scalar_select 0, %s5, %s3
  loop: start=0, step=1, limit=4
  $region2: #{bias3d.1} parent=0 // loop_pre_header
    _
  $region3: #{bias3d.1} parent=0 // loop_header
    %s8 = sphi 0, %s12
    %p9 = scmp.ge.s32.totalorder %s8, 4
    %s15 = sphi 0, %s27
    %s16 = sphi 0, %s23
    %s17 = sphi 0, %s15
    %s18 = sphi 0, %s16
    %s19 = sphi 0, %s17
    %s20 = sphi 0, %s18
    %s32 = sphi 0, %s34
    %s35 = sphi 0, %s32
    %s36 = sphi 0, %s35
    %s52 = sphi 0, %s36
    %s58 = sphi 0, %s60
    %s61 = sphi 0, %s58
    %s62 = sphi 0, %s61
    %s78 = sphi 0, %s62
    %s86 = sphi 0, %s88
    %s89 = sphi 0, %s86
    %s90 = sphi 0, %s89
    %s106 = sphi 0, %s90
  $region4: #{bias3d.1} parent=0 // loop_header_branch
    %11 = sbr.rel (%p9) target = $region8
  $region5: #{bias3d.1} parent=0 // loop_body
    %s13 = ssub.s32 %s8, 1
    %s14 = ssub.s32 %s8, 2
    %s21 = sadd.s32 1, %s16
    %p22 = scmp.ge.s32.totalorder %s21, 2
    %s23 = scalar_select %p22, 0, %s21
    %s24 = sadd.s32 1, %s15
    %s25 = scalar_select %p22, %s24, %s15
    %p26 = scmp.ge.s32.totalorder %s25, 1
    %s27 = scalar_select %p26, 0, %s25
    %s28 = ssub.s32 %s15, %s27
    %s29 = ssub.s32 %s16, %s23
    %s30 = sor.u32 %s28, %s29
    %p31 = scmp.eq.s32.totalorder %s30, 0
    %s33 = sadd.s32 %s32, 1
    %s34 = scalar_select %p31, %s32, %s33
    %p37 = pneg %p31
    %p38 = scmp.eq.s32.totalorder %s8, 1
    %p39 = por %p37, %p38
    %p40 = scmp.ne.s32.totalorder %s32, %s35
    %p41 = scmp.eq.s32.totalorder %s8, 0
    %p42 = por %p40, %p41
    %p43 = scmp.ne.s32.totalorder %s32, %s35
    %p44 = scmp.eq.s32.totalorder %s13, 1
    %p45 = por %p43, %p44
    %p46 = scmp.ne.s32.totalorder %s35, %s36
    %p47 = scmp.eq.s32.totalorder %s13, 0
    %p48 = por %p46, %p47
    %p49 = scmp.ne.s32.totalorder %s35, %s36
    %p50 = scmp.eq.s32.totalorder %s14, 1
    %p51 = por %p49, %p50
    %p53 = scmp.ne.s32.totalorder %s36, %s52
    %p54 = scmp.eq.s32.totalorder %s14, 0
    %p55 = por %p53, %p54
    %s56 = ssub.s32 %s15, %s27
    %p57 = scmp.eq.s32.totalorder %s56, 0
    %s59 = sadd.s32 %s58, 1
    %s60 = scalar_select %p57, %s58, %s59
    %p63 = pneg %p57
    %p64 = scmp.eq.s32.totalorder %s8, 1
    %p65 = por %p63, %p64
    %p66 = scmp.ne.s32.totalorder %s58, %s61
    %p67 = scmp.eq.s32.totalorder %s8, 0
    %p68 = por %p66, %p67
    %p69 = scmp.ne.s32.totalorder %s58, %s61
    %p70 = scmp.eq.s32.totalorder %s13, 1
    %p71 = por %p69, %p70
    %p72 = scmp.ne.s32.totalorder %s61, %s62
    %p73 = scmp.eq.s32.totalorder %s13, 0
    %p74 = por %p72, %p73
    %p75 = scmp.ne.s32.totalorder %s61, %s62
    %p76 = scmp.eq.s32.totalorder %s14, 1
    %p77 = por %p75, %p76
    %p79 = scmp.ne.s32.totalorder %s62, %s78
    %p80 = scmp.eq.s32.totalorder %s14, 0
    %p81 = por %p79, %p80
    %s82 = ssub.s32 %s15, %s27
    %s83 = ssub.s32 %s16, %s23
    %s84 = sor.u32 %s82, %s83
    %p85 = scmp.eq.s32.totalorder %s84, 0
    %s87 = sadd.s32 %s86, 1
    %s88 = scalar_select %p85, %s86, %s87
    %p91 = pneg %p85
    %p92 = scmp.eq.s32.totalorder %s8, 1
    %p93 = por %p91, %p92
    %p94 = scmp.ne.s32.totalorder %s86, %s89
    %p95 = scmp.eq.s32.totalorder %s8, 0
    %p96 = por %p94, %p95
    %p97 = scmp.ne.s32.totalorder %s86, %s89
    %p98 = scmp.eq.s32.totalorder %s13, 1
    %p99 = por %p97, %p98
    %p100 = scmp.ne.s32.totalorder %s89, %s90
    %p101 = scmp.eq.s32.totalorder %s13, 0
    %p102 = por %p100, %p101
    %p103 = scmp.ne.s32.totalorder %s89, %s90
    %p104 = scmp.eq.s32.totalorder %s14, 1
    %p105 = por %p103, %p104
    %p107 = scmp.ne.s32.totalorder %s90, %s106
    %p108 = scmp.eq.s32.totalorder %s14, 0
    %p109 = por %p107, %p108
    %p110 = scmp.le.s32.totalorder 1, %s8
    %p111 = scmp.lt.s32.totalorder %s8, 3
    %p112 = pnand %p110, %p111
    %p113 = pneg %p112
    // Predicated region
    $region9: #{bias3d.1} parent=5 // pred_check
      _
    $region10: #{bias3d.1} parent=5 // pred_check_branch
      %115 = sbr.rel (%p112) target = $region12
    $region11: #{bias3d.1} parent=5 // pred_region
      %s116 = ssub.s32 %s8, 1
      // Predicated region
      $region13: #{bias3d.1} parent=11 // pred_check
        %p117 = pneg %p74
      $region14: #{bias3d.1} parent=11 // pred_check_branch
        %119 = sbr.rel (%p117) target = $region16
      $region15: #{bias3d.1} parent=11 // pred_region
        %p120 = scmp.lt.s32.totalorder %s17, 0
        %s121 = scalar_select %p120, %s17, 0
        %s122 = smul.addr %s121, 8
        %s123 = scalar_lea.vmem %s1, %s122
      $region16: #{bias3d.1} parent=11 // pred_fallthru
        _
    $region12: #{bias3d.1} parent=5 // pred_fallthru
      _
    %p124 = scmp.lt.s32.totalorder %s8, 2
    // Predicated region
    $region17: #{bias3d.1} parent=5 // pred_check
      %p125 = pneg %p124
    $region18: #{bias3d.1} parent=5 // pred_check_branch
      %127 = sbr.rel (%p125) target = $region20
    $region19: #{bias3d.1} parent=5 // pred_region
      // Predicated region
      $region21: #{bias3d.1} parent=19 // pred_check
        %p128 = pneg %p42
      $region22: #{bias3d.1} parent=19 // pred_check_branch
        %130 = sbr.rel (%p128) target = $region24
      $region23: #{bias3d.1} parent=19 // pred_region
        %s131 = smul.u32 2, %s16
        %p132 = scmp.lt.s32.totalorder %s15, 0
        %s133 = scalar_select %p132, %s15, 0
        %p134 = scmp.lt.s32.totalorder %s131, 3
        %s135 = scalar_select %p134, %s131, 3
        %s136 = smul.addr %s133, 4
        %s137 = sadd.s32 %s135, %s136
        %s138 = smul.addr %s137, 8
        %s139 = scalar_lea.vmem %s0, %s138
        %s140 = smul.u32 2, %s16
      $region24: #{bias3d.1} parent=19 // pred_fallthru
        _
    $region20: #{bias3d.1} parent=5 // pred_fallthru
      _
    %p141 = scmp.le.s32.totalorder 1, %s8
    %p142 = scmp.lt.s32.totalorder %s8, 3
    %p143 = pnand %p141, %p142
    %p144 = pneg %p143
    // Predicated region
    $region25: #{bias3d.1} parent=5 // pred_check
      _
    $region26: #{bias3d.1} parent=5 // pred_check_branch
      %146 = sbr.rel (%p143) target = $region28
    $region27: #{bias3d.1} parent=5 // pred_region
      %s147 = ssub.s32 %s8, 1
      %s148 = smul.u32 2, %s18
      %p149 = scmp.lt.s32.totalorder %s17, 0
      %s150 = scalar_select %p149, %s17, 0
      %p151 = scmp.lt.s32.totalorder %s148, 3
      %s152 = scalar_select %p151, %s148, 3
      %s153 = smul.addr %s150, 4
      %s154 = sadd.s32 %s152, %s153
      %s155 = smul.addr %s154, 8
      %s156 = scalar_lea.vmem %s0, %s155
      %p157 = pneg %p48
      %p158 = pneg %p45
      %p159 = scmp.lt.s32.totalorder %s17, 0
      %s160 = scalar_select %p159, %s17, 0
      %s161 = smul.addr %s160, 8
      %s162 = scalar_lea.vmem %s1, %s161
      %p163 = pneg %p74
      %p164 = pneg %p71
      %p165 = pneg %p102
      %p166 = pneg %p99
      %s167 = smul.u32 2, %s18
      %p168 = scmp.lt.s32.totalorder %s17, 0
      %s169 = scalar_select %p168, %s17, 0
      %p170 = scmp.lt.s32.totalorder %s167, 3
      %s171 = scalar_select %p170, %s167, 3
      %s172 = smul.addr %s169, 4
      %s173 = sadd.s32 %s171, %s172
      %s174 = smul.addr %s173, 8
      %s175 = scalar_lea.vmem %s2, %s174
      %s176 = smul.u32 2, %s18
      %p177 = scmp.lt.s32.totalorder %s17, 0
      %s178 = scalar_select %p177, %s17, 0
      %p179 = scmp.lt.s32.totalorder %s176, 3
      %s180 = scalar_select %p179, %s176, 3
      %s181 = smul.addr %s178, 4
      %s182 = sadd.s32 %s180, %s181
      %s183 = smul.addr %s182, 8
      %s184 = scalar_lea.vmem %s0, %s183
      %s185 = smul.u32 2, %s18
      %p186 = scmp.lt.s32.totalorder %s17, 0
      %s187 = scalar_select %p186, %s17, 0
      %s188 = smul.addr %s187, 8
      %s189 = scalar_lea.vmem %s1, %s188
      %s190 = smul.u32 2, %s18
      %p191 = scmp.lt.s32.totalorder %s17, 0
      %s192 = scalar_select %p191, %s17, 0
      %p193 = scmp.lt.s32.totalorder %s190, 3
      %s194 = scalar_select %p193, %s190, 3
      %s195 = smul.addr %s192, 4
      %s196 = sadd.s32 %s194, %s195
      %s197 = smul.addr %s196, 8
      %s198 = scalar_lea.vmem %s2, %s197
      %s199 = smul.u32 2, %s18
      %v200 = vld [vmem:[%s184] sm:$0xff]
      %v201 = vld [vmem:[%s184 + $0x8] sm:$0xff]
      %v202 = vld [vmem:[%s189] sm:$0xff]
      %204 = vset.pattern.permute.xlu0 0
      %205 = vperm.xlu0 %204, %v202
      %v206 = vpop.permute.xlu0 %205
      %v208 = vadd.f32 %v200, %v206
      %v209 = vadd.f32 %v201, %v206
      %210 = vst [vmem:[%s198] sm:$0xff] %v208
      %211 = vst [vmem:[%s198 + $0x8] sm:$0xff] %v209
      %s212 = smul.u32 2, %s18
      %p213 = scmp.lt.s32.totalorder %s17, 0
      %s214 = scalar_select %p213, %s17, 0
      %p215 = scmp.lt.s32.totalorder %s212, 3
      %s216 = scalar_select %p215, %s212, 3
      %s217 = smul.addr %s214, 4
      %s218 = sadd.s32 %s216, %s217
      %s219 = smul.addr %s218, 8
      %s220 = scalar_lea.vmem %s2, %s219
      // Predicated region
      $region29: #{bias3d.1} parent=27 // pred_check
        %p221 = pneg %p99
      $region30: #{bias3d.1} parent=27 // pred_check_branch
        %223 = sbr.rel (%p221) target = $region32
      $region31: #{bias3d.1} parent=27 // pred_region
        %s224 = smul.u32 2, %s18
      $region32: #{bias3d.1} parent=27 // pred_fallthru
        _
    $region28: #{bias3d.1} parent=5 // pred_fallthru
      _
    %p225 = scmp.le.s32.totalorder 2, %s8
    // Predicated region
    $region33: #{bias3d.1} parent=5 // pred_check
      %p226 = pneg %p225
    $region34: #{bias3d.1} parent=5 // pred_check_branch
      %228 = sbr.rel (%p226) target = $region36
    $region35: #{bias3d.1} parent=5 // pred_region
      %s229 = ssub.s32 %s8, 2
      // Predicated region
      $region37: #{bias3d.1} parent=35 // pred_check
        %p230 = pneg %p105
      $region38: #{bias3d.1} parent=35 // pred_check_branch
        %232 = sbr.rel (%p230) target = $region40
      $region39: #{bias3d.1} parent=35 // pred_region
        %s233 = smul.u32 2, %s20
        %p234 = scmp.lt.s32.totalorder %s19, 0
        %s235 = scalar_select %p234, %s19, 0
        %p236 = scmp.lt.s32.totalorder %s233, 3
        %s237 = scalar_select %p236, %s233, 3
        %s238 = smul.addr %s235, 4
        %s239 = sadd.s32 %s237, %s238
        %s240 = smul.addr %s239, 8
        %s241 = scalar_lea.vmem %s2, %s240
      $region40: #{bias3d.1} parent=35 // pred_fallthru
        _
    $region36: #{bias3d.1} parent=5 // pred_fallthru
      _
  $region6: #{bias3d.1} parent=0 // loop_footer
    %s12 = sadd.s32 1, %s8
  $region7: #{bias3d.1} parent=0 // loop_footer_branch
    %7 = sbr.rel target = $region3
  $region8: #{bias3d.1} parent=0 // loop_exit
    _

</llo_original>
